<compile_context>
chip_gen: v6e
topology: v6e:2x2x1
jax: 0.10.0
libtpu: 0.0.40
codegen_flags: <defaults>
</compile_context>

<pallas_src>
import jax
import jax.numpy as jnp
from jax.experimental import pallas as pl
from jax.experimental.pallas import tpu as pltpu

D_in = 1
H = 2
D_out = 1

_LANE = 128            # batch mapped onto the 128-lane axis
_SUBLANE = 8           # (8, 128) tiling constraint on block shapes
_MAX_BLOCK_ROWS = 4096 # 4096x128 f32 = 2 MiB/buffer; 2 arrays x 2 buffers = 8 MiB VMEM
_MIN_BLOCK_ROWS = 512  # below ~512 rows the ~0.35us/step overhead starts to dominate


def _round_up(n, m):
    return ((n + m - 1) // m) * m


def _choose_block_rows(rows):
    """Pick the batch-tile height (rows of 128 lanes) per grid step."""
    if rows <= _MIN_BLOCK_ROWS:
        # Single block equal to the full array (allowed by the (8,128) rule).
        return rows
    # Prefer >= 2 grid steps (keeps both v7x TensorCores busy) without
    # dropping below the efficient streaming size or exceeding the VMEM cap.
    half = _round_up(pl.cdiv(rows, 2), _SUBLANE)
    return min(_MAX_BLOCK_ROWS, max(_MIN_BLOCK_ROWS, half))


def _sigmoid(z):
    # tanh-form sigmoid: one EUP push per call; the extra mul/adds ride the
    # 4 free VALU slots of this HBM-bound kernel.
    return 0.5 * jnp.tanh(0.5 * z) + 0.5


def mlp_kernel(p_ref, x_ref, o_ref):
    # p_ref: SMEM f32[7] = [w1_0, w1_1, b1_0, b1_1, w2_0, w2_1, b2]
    # x_ref: VMEM f32[block_rows, 128]  (lane-dense slab of the batch)
    # o_ref: VMEM f32[block_rows, 128]
    x = x_ref[...]
    w10 = p_ref[0]
    w11 = p_ref[1]
    b10 = p_ref[2]
    b11 = p_ref[3]
    w20 = p_ref[4]
    w21 = p_ref[5]
    b2 = p_ref[6]

    a0 = _sigmoid(w10 * x + b10)          # hidden unit 0 (== self.a1[:, 0])
    a1 = _sigmoid(w11 * x + b11)          # hidden unit 1 (== self.a1[:, 1])
    o_ref[...] = _sigmoid(w20 * a0 + w21 * a1 + b2)


def net_forward(x, w1, b1, w2, b2):
    """x: [N, D_in]; w1: [H, D_in]; b1: [H]; w2: [D_out, H]; b2: [D_out]."""
    N = x.shape[0]
    x_flat = x.reshape(-1).astype(jnp.float32)        # D_in == 1 -> [N]

    # Lane-dense layout: pad only to one (8,128) tile multiple (<=1023 dead
    # elements); ragged last grid block is masked by Pallas on store.
    rows = _round_up(pl.cdiv(N, _LANE), _SUBLANE)
    padded = rows * _LANE
    if padded != N:
        x_flat = jnp.pad(x_flat, (0, padded - N))
    x_slab = x_flat.reshape(rows, _LANE)              # contiguous -> free reshape

    # All 7 parameters packed as SMEM scalars.
    params = jnp.stack(
        [w1[0, 0], w1[1, 0], b1[0], b1[1], w2[0, 0], w2[0, 1], b2[0]]
    ).astype(jnp.float32)

    block_rows = _choose_block_rows(rows)
    grid = (pl.cdiv(rows, block_rows),)

    out = pl.pallas_call(
        mlp_kernel,
        out_shape=jax.ShapeDtypeStruct((rows, _LANE), jnp.float32),
        grid=grid,
        in_specs=[
            pl.BlockSpec(memory_space=pltpu.MemorySpace.SMEM),      # params
            # If xprof shows exposed DMA at this block size, add
            # pipeline_mode=pl.Buffered(3) here (and on out_specs).
            pl.BlockSpec((block_rows, _LANE), lambda i: (i, 0)),    # x slab
        ],
        out_specs=pl.BlockSpec((block_rows, _LANE), lambda i: (i, 0)),
        compiler_params=pltpu.CompilerParams(
            dimension_semantics=("parallel",),      # independent row blocks
            vmem_limit_bytes=32 * 1024 * 1024,      # explicit; max use ~8 MiB
        ),
    )(params, x_slab)

    # TODO(synk): callers that can consume the lane-dense [rows,128] slab
    # directly avoid this final slice (one extra HBM pass over the output).
    return out.reshape(-1)[:N].reshape(N, D_out)


def _init_linear(key, fan_out, fan_in):
    # Deterministic init mimicking PyTorch's default Linear init:
    # U(-1/sqrt(fan_in), 1/sqrt(fan_in)) for both weight and bias.
    kw, kb = jax.random.split(key)
    bound = 1.0 / jnp.sqrt(jnp.float32(fan_in))
    w = jax.random.uniform(kw, (fan_out, fan_in), jnp.float32, -bound, bound)
    b = jax.random.uniform(kb, (fan_out,), jnp.float32, -bound, bound)
    return w, b


if __name__ == "__main__":
    key = jax.random.PRNGKey(0)
    kx, k1, k2 = jax.random.split(key, 3)

    w1, b1 = _init_linear(k1, H, D_in)      # linear1: Linear(D_in, H)
    w2, b2 = _init_linear(k2, D_out, H)     # linear2: Linear(H, D_out)

    def ref_fn(x):
        return jax.nn.sigmoid(jax.nn.sigmoid(x @ w1.T + b1) @ w2.T + b2)

    # N=1000: single small block, exercises the <=1023-element tile pad.
    # N=100000: multi-block grid with a ragged, masked final block.
    for N in (1000, 100_000):
        x = jax.random.normal(jax.random.fold_in(kx, N), (N, D_in), jnp.float32)
        yhat = jax.block_until_ready(net_forward(x, w1, b1, w2, b2))
        ref = ref_fn(x)
        assert yhat.shape == (N, D_out)
        assert jnp.allclose(yhat, ref, atol=1e-4, rtol=1e-4), float(
            jnp.max(jnp.abs(yhat - ref))
        )

    print("KERNEL_OK")
</pallas_src>

<mosaic_0001>
module attributes {stable_mosaic.version = 11 : i64} {
  func.func @mlp_kernel(%arg0: i32, %arg1: memref<7xf32, #tpu.memory_space<smem>>, %arg2: memref<8x128xf32, #tpu.memory_space<vmem>>, %arg3: memref<8x128xf32, #tpu.memory_space<vmem>>) attributes {dimension_semantics = [#tpu.dimension_semantics<parallel>], iteration_bounds = array<i64: 1>, scalar_prefetch = 0 : i64, scratch_operands = 0 : i64, tpu.core_type = #tpu.core_type<tc>, window_params = [{transform_indices = @transform_0, window_bounds = array<i64: 7>}, {transform_indices = @transform_1, window_bounds = array<i64: 8, 128>}, {transform_indices = @transform_2, window_bounds = array<i64: 8, 128>}]} {
    %c0 = arith.constant 0 : index
    %c0_0 = arith.constant 0 : index
    %0 = vector.load %arg2[%c0, %c0_0] : memref<8x128xf32, #tpu.memory_space<vmem>>, vector<8x128xf32>
    %c0_1 = arith.constant 0 : index
    %1 = memref.load %arg1[%c0_1] : memref<7xf32, #tpu.memory_space<smem>>
    %c1 = arith.constant 1 : index
    %2 = memref.load %arg1[%c1] : memref<7xf32, #tpu.memory_space<smem>>
    %c2 = arith.constant 2 : index
    %3 = memref.load %arg1[%c2] : memref<7xf32, #tpu.memory_space<smem>>
    %c3 = arith.constant 3 : index
    %4 = memref.load %arg1[%c3] : memref<7xf32, #tpu.memory_space<smem>>
    %c4 = arith.constant 4 : index
    %5 = memref.load %arg1[%c4] : memref<7xf32, #tpu.memory_space<smem>>
    %c5 = arith.constant 5 : index
    %6 = memref.load %arg1[%c5] : memref<7xf32, #tpu.memory_space<smem>>
    %c6 = arith.constant 6 : index
    %7 = memref.load %arg1[%c6] : memref<7xf32, #tpu.memory_space<smem>>
    %8 = vector.broadcast %1 : f32 to vector<8x128xf32>
    %9 = arith.mulf %8, %0 : vector<8x128xf32>
    %10 = vector.broadcast %3 : f32 to vector<8x128xf32>
    %11 = arith.addf %9, %10 : vector<8x128xf32>
    %cst = arith.constant 5.000000e-01 : f32
    %12 = vector.broadcast %cst : f32 to vector<8x128xf32>
    %13 = arith.mulf %12, %11 : vector<8x128xf32>
    %14 = math.tanh %13 : vector<8x128xf32>
    %cst_2 = arith.constant 5.000000e-01 : f32
    %15 = vector.broadcast %cst_2 : f32 to vector<8x128xf32>
    %16 = arith.mulf %15, %14 : vector<8x128xf32>
    %cst_3 = arith.constant 5.000000e-01 : f32
    %17 = vector.broadcast %cst_3 : f32 to vector<8x128xf32>
    %18 = arith.addf %16, %17 : vector<8x128xf32>
    %19 = vector.broadcast %2 : f32 to vector<8x128xf32>
    %20 = arith.mulf %19, %0 : vector<8x128xf32>
    %21 = vector.broadcast %4 : f32 to vector<8x128xf32>
    %22 = arith.addf %20, %21 : vector<8x128xf32>
    %cst_4 = arith.constant 5.000000e-01 : f32
    %23 = vector.broadcast %cst_4 : f32 to vector<8x128xf32>
    %24 = arith.mulf %23, %22 : vector<8x128xf32>
    %25 = math.tanh %24 : vector<8x128xf32>
    %cst_5 = arith.constant 5.000000e-01 : f32
    %26 = vector.broadcast %cst_5 : f32 to vector<8x128xf32>
    %27 = arith.mulf %26, %25 : vector<8x128xf32>
    %cst_6 = arith.constant 5.000000e-01 : f32
    %28 = vector.broadcast %cst_6 : f32 to vector<8x128xf32>
    %29 = arith.addf %27, %28 : vector<8x128xf32>
    %30 = vector.broadcast %5 : f32 to vector<8x128xf32>
    %31 = arith.mulf %30, %18 : vector<8x128xf32>
    %32 = vector.broadcast %6 : f32 to vector<8x128xf32>
    %33 = arith.mulf %32, %29 : vector<8x128xf32>
    %34 = arith.addf %31, %33 : vector<8x128xf32>
    %35 = vector.broadcast %7 : f32 to vector<8x128xf32>
    %36 = arith.addf %34, %35 : vector<8x128xf32>
    %cst_7 = arith.constant 5.000000e-01 : f32
    %37 = vector.broadcast %cst_7 : f32 to vector<8x128xf32>
    %38 = arith.mulf %37, %36 : vector<8x128xf32>
    %39 = math.tanh %38 : vector<8x128xf32>
    %cst_8 = arith.constant 5.000000e-01 : f32
    %40 = vector.broadcast %cst_8 : f32 to vector<8x128xf32>
    %41 = arith.mulf %40, %39 : vector<8x128xf32>
    %cst_9 = arith.constant 5.000000e-01 : f32
    %42 = vector.broadcast %cst_9 : f32 to vector<8x128xf32>
    %43 = arith.addf %41, %42 : vector<8x128xf32>
    %c0_10 = arith.constant 0 : index
    %c0_11 = arith.constant 0 : index
    %44 = vector.load %arg3[%c0_10, %c0_11] : memref<8x128xf32, #tpu.memory_space<vmem>>, vector<8x128xf32>
    tpu.vector_store %arg3[%c0_10, %c0_11], %43 {strides = array<i32>} : memref<8x128xf32, #tpu.memory_space<vmem>>, vector<8x128xf32>,
    return
  }
  func.func @transform_0(%arg0: i32) -> i32 {
    %c0_i32 = arith.constant 0 : i32
    %c0_i32_0 = arith.constant 0 : i32
    return %c0_i32 : i32
  }
  func.func @transform_1(%arg0: i32) -> (i32, i32) {
    %c0_i32 = arith.constant 0 : i32
    %c0_i32_0 = arith.constant 0 : i32
    return %arg0, %c0_i32 : i32, i32
  }
  func.func @transform_2(%arg0: i32) -> (i32, i32) {
    %c0_i32 = arith.constant 0 : i32
    %c0_i32_0 = arith.constant 0 : i32
    return %arg0, %c0_i32 : i32, i32
  }
}

</mosaic_0001>

<llo_original>
// kernel: tpu_custom_call.1
$region0: #{tpu_custom_call.1}
  #allocation0 [shape = 'u32[]', space=smem, size = 0x4, offset = 0x4, fixed_abs, tag = 'smem constant byte address 0x4 - core index']
  #allocation1 [shape = 'u32[144,128]{1,0:T(1,128)}', space=vmem, size = 0x12000, scoped, tag = 'internal scratch']
  %s0 = inlined_call_operand.hbm [shape: f32[7], index: 0, kind: input, shape index: {}]
  %s1 = inlined_call_operand.hbm [shape: f32[8,128], index: 1, kind: input, shape index: {}]
  %s2 = inlined_call_operand.hbm [shape: f32[8,128], index: 2, kind: output, shape index: {}]
  %s3 = sld [smem:[#allocation0]]
  $region26: #{tpu_custom_call.1} parent=0
    _
  %s5 = ssub.s32 1, %s3
  %s6 = scalar_select 0, %s5, %s3
  $region1: #{tpu_custom_call.1} parent=0
    #allocation2 [shape = 'u8[512]{0}', space=smem, size = 0x200, scoped, tag = 'input window, operand 0, single buffered']
    #allocation3 [shape = 's32[1]{0}', space=sflag, size = 0x4, scoped, tag = 'scoped memory for tpu_custom_call.1']
    #allocation4 [shape = 's32[1]{0}', space=sflag, size = 0x4, scoped, tag = 'scoped memory for tpu_custom_call.1']
    #allocation5 [shape = 's32[1]{0}', space=sflag, size = 0x4, scoped, tag = 'scoped memory for tpu_custom_call.1']
    #allocation6 [shape = 'u8[4096]{0}', space=vmem, size = 0x1000, scoped, tag = 'input window, operand 1, single buffered']
    #allocation7 [shape = 'u8[4096]{0}', space=vmem, size = 0x1000, scoped, tag = 'output window, operand 0, single buffered']
    %7 = vsyncpa [#allocation5], 0
    %8 = vsyncpa [#allocation3], 0
    %9 = vsyncpa [#allocation4], 0
    // Predicated region
    $region2: #{tpu_custom_call.1} parent=1 // pred_check
      _
    $region3: #{tpu_custom_call.1} parent=1 // pred_check_branch
      %11 = sbr.rel (0) target = $region5
    $region4: #{tpu_custom_call.1} parent=1 // pred_region
      %s13 = ssub.s32 16, 16
      %14 = vsyncadd [#allocation5], %s13
      %17 = dma.hbm_to_smem %s0, 16, [#allocation2], [#allocation5]
    $region5: #{tpu_custom_call.1} parent=1 // pred_fallthru
      _
    // Predicated region
    $region6: #{tpu_custom_call.1} parent=1 // pred_check
      _
    $region7: #{tpu_custom_call.1} parent=1 // pred_check_branch
      %19 = sbr.rel (0) target = $region9
    $region8: #{tpu_custom_call.1} parent=1 // pred_region
      %s21 = ssub.s32 128, 128
      %22 = vsyncadd [#allocation3], %s21
      %s24 = sshll.u32 [#allocation6], 4
      %s25 = int_to_ptr.vmem [resolvable:$true] %s24
      %27 = dma.hbm_to_vmem [thread:$0]  %s1, 128, %s25, [#allocation3]
    $region9: #{tpu_custom_call.1} parent=1 // pred_fallthru
      _
    // Predicated region
    $region10: #{tpu_custom_call.1} parent=1 // pred_check
      _
    $region11: #{tpu_custom_call.1} parent=1 // pred_check_branch
      %29 = sbr.rel (0) target = $region13
    $region12: #{tpu_custom_call.1} parent=1 // pred_region
      %30 = dma.done [#allocation5], 16
    $region13: #{tpu_custom_call.1} parent=1 // pred_fallthru
      _
    // Predicated region
    $region14: #{tpu_custom_call.1} parent=1 // pred_check
      _
    $region15: #{tpu_custom_call.1} parent=1 // pred_check_branch
      %32 = sbr.rel (0) target = $region17
    $region16: #{tpu_custom_call.1} parent=1 // pred_region
      %33 = dma.done [#allocation3], 128
    $region17: #{tpu_custom_call.1} parent=1 // pred_fallthru
      _
    %34 = sfence
    %v35 = vld [vmem:[#allocation6] sm:$0xff]
    %s36 = sld [smem:[#allocation2]]
    %s37 = sld [smem:[#allocation2 + $0x1]]
    %s38 = sld [smem:[#allocation2 + $0x2]]
    %s39 = sld [smem:[#allocation2 + $0x3]]
    %s40 = sld [smem:[#allocation2 + $0x4]]
    %s41 = sld [smem:[#allocation2 + $0x5]]
    %s42 = sld [smem:[#allocation2 + $0x6]]
    %v43 = vstv %s36
    %v44 = vmul.f32 %v43, %v35
    %v45 = vstv %s38
    %v46 = vadd.f32 %v44, %v45
    %v47 = vmul.f32 %v46, 0.5
    %v48 = vtanh.pop %v47
    %v49 = vmul.f32 %v48, 0.5
    %v50 = vadd.f32 %v49, 0.5
    %v51 = vstv %s37
    %v52 = vmul.f32 %v51, %v35
    %v53 = vstv %s39
    %v54 = vadd.f32 %v52, %v53
    %v55 = vmul.f32 %v54, 0.5
    %v56 = vtanh.pop %v55
    %v57 = vmul.f32 %v56, 0.5
    %v58 = vadd.f32 %v57, 0.5
    %v59 = vstv %s40
    %v60 = vmul.f32 %v59, %v50
    %v61 = vstv %s41
    %v62 = vmul.f32 %v61, %v58
    %v63 = vadd.f32 %v60, %v62
    %v64 = vstv %s42
    %v65 = vadd.f32 %v63, %v64
    %v66 = vmul.f32 %v65, 0.5
    %v67 = vtanh.pop %v66
    %v68 = vmul.f32 %v67, 0.5
    %v69 = vadd.f32 %v68, 0.5
    %70 = vst [vmem:[#allocation7] sm:$0xff] %v69
    // Predicated region
    $region18: #{tpu_custom_call.1} parent=1 // pred_check
      _
    $region19: #{tpu_custom_call.1} parent=1 // pred_check_branch
      %72 = sbr.rel (0) target = $region21
    $region20: #{tpu_custom_call.1} parent=1 // pred_region
      %s74 = ssub.s32 128, 128
      %75 = vsyncadd [#allocation4], %s74
      %s77 = sshll.u32 [#allocation7], 4
      %s78 = int_to_ptr.vmem [resolvable:$true] %s77
      %80 = dma.vmem_to_hbm [thread:$0]  %s78, 128, %s2, [#allocation4]
    $region21: #{tpu_custom_call.1} parent=1 // pred_fallthru
      _
    // Predicated region
    $region22: #{tpu_custom_call.1} parent=1 // pred_check
      _
    $region23: #{tpu_custom_call.1} parent=1 // pred_check_branch
      %82 = sbr.rel (0) target = $region25
    $region24: #{tpu_custom_call.1} parent=1 // pred_region
      %83 = dma.done [#allocation4], 128
    $region25: #{tpu_custom_call.1} parent=1 // pred_fallthru
      _
    %84 = vsyncpa [#allocation3], 1
    %85 = vsyncpa [#allocation4], 1
    %86 = vsyncpa [#allocation5], 1

</llo_original>
